<compile_context>
chip_gen: v6e
topology: v6e:2x2x1
jax: 0.10.0
libtpu: 0.0.40
codegen_flags: <defaults>
</compile_context>

<pallas_src>
import functools

import jax
import jax.numpy as jnp
from jax.experimental import pallas as pl
from jax.experimental.pallas import tpu as pltpu

EPS = 1e-6                      # matches the module's explicit eps=1e-06
DROPOUT_P = 0.7
KEEP_SCALE = 1.0 / (1.0 - DROPOUT_P)
# Drop iff bits < p * 2^32, so keep-probability = 1 - p.
DROP_THRESHOLD = int(round(DROPOUT_P * (2.0 ** 32)))


def _round_up(n, m):
    return ((n + m - 1) // m) * m


def linear_model_kernel(n_rows, x_ref, bits_ref, w_ref, b_ref, o_ref):
    """Fused BN(train-mode batch stats) -> Dropout(p=0.7) -> Linear.

    x_ref:    (Bp, Dp) f32  activations (zero-padded rows/cols)
    bits_ref: (Bp, Dp) u32  uniform random bits for the dropout mask
    w_ref:    (Dp, Cp) f32  weight pre-transposed to (in, out): MXU-ready RHS
    b_ref:    (1,  Cp) f32  bias row
    o_ref:    (Bp, Cp) f32  output (lane-dense: Cp is a multiple of 128)
    """
    x = x_ref[...]

    # One-pass batch statistics (biased variance, as BatchNorm uses for the
    # normalization itself).  Divide by the *true* batch size so zero-padded
    # rows do not perturb the stats.
    inv_n = 1.0 / float(n_rows)
    s1 = jnp.sum(x, axis=0, keepdims=True)          # (1, Dp)
    s2 = jnp.sum(x * x, axis=0, keepdims=True)      # (1, Dp)
    mean = s1 * inv_n
    var = jnp.maximum(s2 * inv_n - mean * mean, 0.0)

    # Fold inv_std and the dropout 1/(1-p) rescale into one row vector.
    scale = jax.lax.rsqrt(var + EPS) * KEEP_SCALE   # (1, Dp)

    # Dropout via integer threshold compare (keep prob = 1 - p).
    keep = bits_ref[...] >= jnp.uint32(DROP_THRESHOLD)
    x_drop = jnp.where(keep, (x - mean) * scale, 0.0)

    # Linear: RHS is already (D, C), no transpose needed.
    y = jnp.dot(x_drop, w_ref[...], preferred_element_type=jnp.float32)
    o_ref[...] = y + b_ref[...]


@functools.partial(jax.jit, static_argnames=())
def linear_model_forward(x, w, b, dropout_key):
    B, D = x.shape
    C = w.shape[0]

    # Pad to (8, 128)-aligned tiles -> lane-dense loads/stores.  Padded feature
    # columns are all-zero (normalize to 0, zero weight rows), padded output
    # columns have zero weight/bias; everything padded is sliced off below.
    Bp = _round_up(B, 8)
    Dp = _round_up(D, 128)
    Cp = _round_up(C, 128)

    x_p = jnp.zeros((Bp, Dp), jnp.float32).at[:B, :D].set(x.astype(jnp.float32))
    w_t = jnp.zeros((Dp, Cp), jnp.float32).at[:D, :C].set(w.astype(jnp.float32).T)
    b_p = jnp.zeros((1, Cp), jnp.float32).at[0, :C].set(b.astype(jnp.float32))
    bits = jax.random.bits(dropout_key, (Bp, Dp), dtype=jnp.uint32)

    # Toy sizes fit one VMEM block; for production sizes tile D as an
    # "arbitrary" reduction axis with an f32 VMEM accumulator (two-pass BN
    # stats) and mark B/C tiles "parallel" (megacore / 2-TC sharding), sized
    # per-chip VMEM.
    out = pl.pallas_call(
        functools.partial(linear_model_kernel, B),
        out_shape=jax.ShapeDtypeStruct((Bp, Cp), jnp.float32),
        grid=(1,),
        in_specs=[
            pl.BlockSpec((Bp, Dp), lambda i: (0, 0)),
            pl.BlockSpec((Bp, Dp), lambda i: (0, 0)),
            pl.BlockSpec((Dp, Cp), lambda i: (0, 0)),
            pl.BlockSpec((1, Cp), lambda i: (0, 0)),
        ],
        out_specs=pl.BlockSpec((Bp, Cp), lambda i: (0, 0)),
        compiler_params=pltpu.CompilerParams(
            dimension_semantics=("arbitrary",),
        ),
    )(x_p, bits, w_t, b_p)

    return out[:B, :C], bits


def _reference(x, w, b, bits):
    """Pure-JAX reference with the identical dropout mask."""
    B, D = x.shape
    mean = jnp.mean(x, axis=0, keepdims=True)
    var = jnp.mean((x - mean) ** 2, axis=0, keepdims=True)
    xn = (x - mean) / jnp.sqrt(var + EPS)
    keep = bits[:B, :D] >= jnp.uint32(DROP_THRESHOLD)
    xd = jnp.where(keep, xn * KEEP_SCALE, 0.0)
    return xd @ w.T + b


if __name__ == "__main__":
    batch = 8
    input_dim = 32
    num_classes = 8

    key = jax.random.PRNGKey(0)
    kx, kw, kb, kdrop = jax.random.split(key, 4)

    x = jax.random.normal(kx, (batch, input_dim), dtype=jnp.float32)

    # nn.Linear default init: U(-1/sqrt(fan_in), 1/sqrt(fan_in))
    bound = 1.0 / (input_dim ** 0.5)
    w = jax.random.uniform(kw, (num_classes, input_dim),
                           minval=-bound, maxval=bound, dtype=jnp.float32)
    b = jax.random.uniform(kb, (num_classes,),
                           minval=-bound, maxval=bound, dtype=jnp.float32)

    out, bits = linear_model_forward(x, w, b, kdrop)
    out = jax.block_until_ready(out)

    assert out.shape == (batch, num_classes), out.shape
    assert bool(jnp.all(jnp.isfinite(out)))

    ref = _reference(x, w, b, bits)
    assert bool(jnp.allclose(out, ref, rtol=1e-4, atol=1e-4)), (
        float(jnp.max(jnp.abs(out - ref))))

    print("KERNEL_OK")
</pallas_src>

<mosaic_0001>
module attributes {stable_mosaic.version = 11 : i64} {
  func.func @linear_model_kernel(%arg0: i32, %arg1: memref<8x128xf32, #tpu.memory_space<vmem>>, %arg2: memref<8x128xi32, #tpu.memory_space<vmem>>, %arg3: memref<128x128xf32, #tpu.memory_space<vmem>>, %arg4: memref<1x128xf32, #tpu.memory_space<vmem>>, %arg5: memref<8x128xf32, #tpu.memory_space<vmem>>) attributes {dimension_semantics = [#tpu.dimension_semantics<arbitrary>], iteration_bounds = array<i64: 1>, scalar_prefetch = 0 : i64, scratch_operands = 0 : i64, tpu.core_type = #tpu.core_type<tc>, window_params = [{pipeline_mode = #tpu.pipeline_mode<synchronous>, transform_indices = @transform_0, window_bounds = array<i64: 8, 128>}, {pipeline_mode = #tpu.pipeline_mode<synchronous>, transform_indices = @transform_1, window_bounds = array<i64: 8, 128>}, {pipeline_mode = #tpu.pipeline_mode<synchronous>, transform_indices = @transform_2, window_bounds = array<i64: 128, 128>}, {pipeline_mode = #tpu.pipeline_mode<synchronous>, transform_indices = @transform_3, window_bounds = array<i64: 1, 128>}, {pipeline_mode = #tpu.pipeline_mode<synchronous>, transform_indices = @transform_4, window_bounds = array<i64: 8, 128>}]} {
    %c0 = arith.constant 0 : index
    %c0_0 = arith.constant 0 : index
    %0 = vector.load %arg1[%c0, %c0_0] : memref<8x128xf32, #tpu.memory_space<vmem>>, vector<8x128xf32>
    %cst = arith.constant dense<0.000000e+00> : vector<128xf32>
    %1 = vector.multi_reduction <add>, %0, %cst [0] : vector<8x128xf32> to vector<128xf32>
    %2 = vector.shape_cast %1 : vector<128xf32> to vector<1x128xf32>
    %3 = arith.mulf %0, %0 : vector<8x128xf32>
    %cst_1 = arith.constant dense<0.000000e+00> : vector<128xf32>
    %4 = vector.multi_reduction <add>, %3, %cst_1 [0] : vector<8x128xf32> to vector<128xf32>
    %5 = vector.shape_cast %4 : vector<128xf32> to vector<1x128xf32>
    %cst_2 = arith.constant 1.250000e-01 : f32
    %6 = vector.broadcast %cst_2 : f32 to vector<1x128xf32>
    %7 = arith.mulf %2, %6 : vector<1x128xf32>
    %cst_3 = arith.constant 1.250000e-01 : f32
    %8 = vector.broadcast %cst_3 : f32 to vector<1x128xf32>
    %9 = arith.mulf %5, %8 : vector<1x128xf32>
    %10 = arith.mulf %7, %7 : vector<1x128xf32>
    %11 = arith.subf %9, %10 : vector<1x128xf32>
    %cst_4 = arith.constant 0.000000e+00 : f32
    %12 = vector.broadcast %cst_4 : f32 to vector<1x128xf32>
    %13 = arith.maximumf %11, %12 : vector<1x128xf32>
    %cst_5 = arith.constant 9.99999997E-7 : f32
    %14 = vector.broadcast %cst_5 : f32 to vector<1x128xf32>
    %15 = arith.addf %13, %14 : vector<1x128xf32>
    %16 = math.rsqrt %15 : vector<1x128xf32>
    %cst_6 = arith.constant 3.33333325 : f32
    %17 = vector.broadcast %cst_6 : f32 to vector<1x128xf32>
    %18 = arith.mulf %16, %17 : vector<1x128xf32>
    %c0_7 = arith.constant 0 : index
    %c0_8 = arith.constant 0 : index
    %19 = vector.load %arg2[%c0_7, %c0_8] : memref<8x128xi32, #tpu.memory_space<vmem>>, vector<8x128xi32>
    %c-1288490189_i32 = arith.constant -1288490189 : i32
    %20 = vector.broadcast %c-1288490189_i32 : i32 to vector<8x128xi32>
    %21 = arith.cmpi uge, %19, %20 : vector<8x128xi32>
    %22 = vector.broadcast %7 : vector<1x128xf32> to vector<8x128xf32>
    %23 = arith.subf %0, %22 : vector<8x128xf32>
    %24 = vector.broadcast %18 : vector<1x128xf32> to vector<8x128xf32>
    %25 = arith.mulf %23, %24 : vector<8x128xf32>
    %cst_9 = arith.constant 0.000000e+00 : f32
    %26 = vector.broadcast %cst_9 : f32 to vector<8x128xf32>
    %27 = arith.select %21, %25, %26 : vector<8x128xi1>, vector<8x128xf32>
    %c0_10 = arith.constant 0 : index
    %c0_11 = arith.constant 0 : index
    %28 = vector.load %arg3[%c0_10, %c0_11] : memref<128x128xf32, #tpu.memory_space<vmem>>, vector<128x128xf32>
    %cst_12 = arith.constant dense<0.000000e+00> : vector<8x128xf32>
    %29 = tpu.matmul %27, %28, %cst_12 {dimension_numbers = #tpu.dot_dimension_numbers<[1], [0], [0], [1], [0, 0, 1, 1], [], []>} : vector<8x128xf32>, vector<128x128xf32>, vector<8x128xf32> -> vector<8x128xf32>
    %c0_13 = arith.constant 0 : index
    %c0_14 = arith.constant 0 : index
    %30 = vector.load %arg4[%c0_13, %c0_14] : memref<1x128xf32, #tpu.memory_space<vmem>>, vector<1x128xf32>
    %31 = vector.broadcast %30 : vector<1x128xf32> to vector<8x128xf32>
    %32 = arith.addf %29, %31 : vector<8x128xf32>
    %c0_15 = arith.constant 0 : index
    %c0_16 = arith.constant 0 : index
    %33 = vector.load %arg5[%c0_15, %c0_16] : memref<8x128xf32, #tpu.memory_space<vmem>>, vector<8x128xf32>
    tpu.vector_store %arg5[%c0_15, %c0_16], %32 {strides = array<i32>} : memref<8x128xf32, #tpu.memory_space<vmem>>, vector<8x128xf32>,
    return
  }
  func.func @transform_0(%arg0: i32) -> (i32, i32) {
    %c0_i32 = arith.constant 0 : i32
    %c0_i32_0 = arith.constant 0 : i32
    %c0_i32_1 = arith.constant 0 : i32
    return %c0_i32, %c0_i32_0 : i32, i32
  }
  func.func @transform_1(%arg0: i32) -> (i32, i32) {
    %c0_i32 = arith.constant 0 : i32
    %c0_i32_0 = arith.constant 0 : i32
    %c0_i32_1 = arith.constant 0 : i32
    return %c0_i32, %c0_i32_0 : i32, i32
  }
  func.func @transform_2(%arg0: i32) -> (i32, i32) {
    %c0_i32 = arith.constant 0 : i32
    %c0_i32_0 = arith.constant 0 : i32
    %c0_i32_1 = arith.constant 0 : i32
    return %c0_i32, %c0_i32_0 : i32, i32
  }
  func.func @transform_3(%arg0: i32) -> (i32, i32) {
    %c0_i32 = arith.constant 0 : i32
    %c0_i32_0 = arith.constant 0 : i32
    %c0_i32_1 = arith.constant 0 : i32
    return %c0_i32, %c0_i32_0 : i32, i32
  }
  func.func @transform_4(%arg0: i32) -> (i32, i32) {
    %c0_i32 = arith.constant 0 : i32
    %c0_i32_0 = arith.constant 0 : i32
    %c0_i32_1 = arith.constant 0 : i32
    return %c0_i32, %c0_i32_0 : i32, i32
  }
}

</mosaic_0001>

<llo_original>
// kernel: linear_model_forward.1
$region0: #{linear_model_forward.1}
  #allocation0 [shape = 'u32[]', space=smem, size = 0x4, offset = 0x4, fixed_abs, tag = 'smem constant byte address 0x4 - core index']
  #allocation1 [shape = 'u32[144,128]{1,0:T(1,128)}', space=vmem, size = 0x12000, scoped, tag = 'internal scratch']
  %s0 = inlined_call_operand.vmem [shape: f32[8,128], index: 0, kind: input, shape index: {}]
  %s1 = inlined_call_operand.vmem [shape: u32[8,128], index: 1, kind: input, shape index: {}]
  %s2 = inlined_call_operand.vmem [shape: f32[128,128], index: 2, kind: input, shape index: {}]
  %s3 = inlined_call_operand.vmem [shape: f32[1,128], index: 3, kind: input, shape index: {}]
  %s4 = inlined_call_operand.hbm [shape: f32[8,128], index: 4, kind: output, shape index: {}]
  %s5 = sld [smem:[#allocation0]]
  $region26: #{linear_model_forward.1} parent=0
    _
  %s7 = ssub.s32 1, %s5
  %s8 = scalar_select 0, %s7, %s5
  $region1: #{linear_model_forward.1} parent=0
    #allocation2 [shape = 'u8[4096]{0}', space=vmem, size = 0x1000, scoped, tag = 'output window, operand 0, single buffered']
    #allocation3 [shape = 's32[1]{0}', space=sflag, size = 0x4, scoped, tag = 'scoped memory for linear_model_forward.1']
    %9 = vsyncpa [#allocation3], 0
    // Predicated region
    $region2: #{linear_model_forward.1} parent=1 // pred_check
      _
    $region3: #{linear_model_forward.1} parent=1 // pred_check_branch
      %11 = sbr.rel (0) target = $region5
    $region4: #{linear_model_forward.1} parent=1 // pred_region
      _
    $region5: #{linear_model_forward.1} parent=1 // pred_fallthru
      _
    // Predicated region
    $region6: #{linear_model_forward.1} parent=1 // pred_check
      _
    $region7: #{linear_model_forward.1} parent=1 // pred_check_branch
      %13 = sbr.rel (0) target = $region9
    $region8: #{linear_model_forward.1} parent=1 // pred_region
      _
    $region9: #{linear_model_forward.1} parent=1 // pred_fallthru
      _
    // Predicated region
    $region10: #{linear_model_forward.1} parent=1 // pred_check
      _
    $region11: #{linear_model_forward.1} parent=1 // pred_check_branch
      %15 = sbr.rel (0) target = $region13
    $region12: #{linear_model_forward.1} parent=1 // pred_region
      _
    $region13: #{linear_model_forward.1} parent=1 // pred_fallthru
      _
    // Predicated region
    $region14: #{linear_model_forward.1} parent=1 // pred_check
      _
    $region15: #{linear_model_forward.1} parent=1 // pred_check_branch
      %17 = sbr.rel (0) target = $region17
    $region16: #{linear_model_forward.1} parent=1 // pred_region
      _
    $region17: #{linear_model_forward.1} parent=1 // pred_fallthru
      _
    %v18 = vld [vmem:[%s0] sm:$0xff]
    %v19 = vrot.slane %v18, 4
    %v20 = vadd.f32 %v18, %v19
    %v21 = vrot.slane %v20, 2
    %v22 = vadd.f32 %v20, %v21
    %v23 = vrot.slane %v22, 1
    %v24 = vadd.f32 %v22, %v23
    %v25 = vmul.f32 %v18, %v18
    %v26 = vrot.slane %v25, 4
    %v27 = vadd.f32 %v25, %v26
    %v28 = vrot.slane %v27, 2
    %v29 = vadd.f32 %v27, %v28
    %v30 = vrot.slane %v29, 1
    %v31 = vadd.f32 %v29, %v30
    %v32 = vmul.f32 %v24, 0.125
    %v33 = vmul.f32 %v31, 0.125
    %v34 = vmul.f32 %v32, %v32
    %v35 = vsub.f32 %v33, %v34
    %v36 = vmax.f32 %v35, 0.0
    %v37 = vadd.f32 %v36, 1e-06
    %v38 = vrsqrt.pop %v37
    %v39 = vmul.f32 %v38, 3.3333333
    %v40 = vld [vmem:[%s1] sm:$0xff]
    %vm41 = vcmp.ge.u32.totalorder %v40, 3006477107
    %v42 = vsub.f32 %v18, %v32
    %v43 = vmul.f32 %v42, %v39
    %v44 = vsel %vm41, %v43, 0.0
    %v45 = vld [vmem:[%s2] sm:$0xff]
    %v46 = vld [vmem:[%s2 + $0x8] sm:$0xff]
    %v47 = vld [vmem:[%s2 + $0x10] sm:$0xff]
    %v48 = vld [vmem:[%s2 + $0x18] sm:$0xff]
    %v49 = vld [vmem:[%s2 + $0x20] sm:$0xff]
    %v50 = vld [vmem:[%s2 + $0x28] sm:$0xff]
    %v51 = vld [vmem:[%s2 + $0x30] sm:$0xff]
    %v52 = vld [vmem:[%s2 + $0x38] sm:$0xff]
    %v53 = vld [vmem:[%s2 + $0x40] sm:$0xff]
    %v54 = vld [vmem:[%s2 + $0x48] sm:$0xff]
    %v55 = vld [vmem:[%s2 + $0x50] sm:$0xff]
    %v56 = vld [vmem:[%s2 + $0x58] sm:$0xff]
    %v57 = vld [vmem:[%s2 + $0x60] sm:$0xff]
    %v58 = vld [vmem:[%s2 + $0x68] sm:$0xff]
    %v59 = vld [vmem:[%s2 + $0x70] sm:$0xff]
    %v60 = vld [vmem:[%s2 + $0x78] sm:$0xff]
    %v61 = vld [vmem:[%s3] sm:$0x1]
    %v63 = vlaneseq
    %v64 = vshrl.u32 %v63, 7
    %v65 = vsub.s32 0, %v64
    %v66 = vrot.slane %v61, %v65
    %68 = vmatprep.subr.mxu0 0.0
    %69 = vmatpush1.msra.mxu0 %v60
    %70 = vmatprep.subr.mxu0 0.0
    %71 = vmatpush1.msra.mxu0 %v59
    %72 = vmatprep.subr.mxu0 0.0
    %73 = vmatpush1.msra.mxu0 %v58
    %74 = vmatprep.subr.mxu0 0.0
    %75 = vmatpush1.msra.mxu0 %v57
    %76 = vmatprep.subr.mxu0 0.0
    %77 = vmatpush1.msra.mxu0 %v56
    %78 = vmatprep.subr.mxu0 0.0
    %79 = vmatpush1.msra.mxu0 %v55
    %80 = vmatprep.subr.mxu0 0.0
    %81 = vmatpush1.msra.mxu0 %v54
    %82 = vmatprep.subr.mxu0 0.0
    %83 = vmatpush1.msra.mxu0 %v53
    %84 = vmatprep.subr.mxu0 0.0
    %85 = vmatpush1.msra.mxu0 %v52
    %86 = vmatprep.subr.mxu0 0.0
    %87 = vmatpush1.msra.mxu0 %v51
    %88 = vmatprep.subr.mxu0 0.0
    %89 = vmatpush1.msra.mxu0 %v50
    %90 = vmatprep.subr.mxu0 0.0
    %91 = vmatpush1.msra.mxu0 %v49
    %92 = vmatprep.subr.mxu0 0.0
    %93 = vmatpush1.msra.mxu0 %v48
    %94 = vmatprep.subr.mxu0 0.0
    %95 = vmatpush1.msra.mxu0 %v47
    %96 = vmatprep.subr.mxu0 0.0
    %97 = vmatpush1.msra.mxu0 %v46
    %98 = vmatprep.subr.mxu0 0.0
    %99 = vmatpush1.msra.mxu0 %v45
    %100 = vmatprep.subr.mxu0 0.0
    %101 = vmatpush2.msra.mxu0 0.0
    %102 = vmatprep.subr.mxu0 0.0
    %103 = vmatpush2.msra.mxu0 0.0
    %104 = vmatprep.subr.mxu0 0.0
    %105 = vmatpush2.msra.mxu0 0.0
    %106 = vmatprep.subr.mxu0 0.0
    %107 = vmatpush2.msra.mxu0 0.0
    %108 = vmatprep.subr.mxu0 0.0
    %109 = vmatpush2.msra.mxu0 0.0
    %110 = vmatprep.subr.mxu0 0.0
    %111 = vmatpush2.msra.mxu0 0.0
    %112 = vmatprep.subr.mxu0 0.0
    %113 = vmatpush2.msra.mxu0 0.0
    %114 = vmatprep.subr.mxu0 0.0
    %115 = vmatpush2.msra.mxu0 0.0
    %116 = vmatprep.subr.mxu0 0.0
    %117 = vmatpush2.msra.mxu0 0.0
    %118 = vmatprep.subr.mxu0 0.0
    %119 = vmatpush2.msra.mxu0 0.0
    %120 = vmatprep.subr.mxu0 0.0
    %121 = vmatpush2.msra.mxu0 0.0
    %122 = vmatprep.subr.mxu0 0.0
    %123 = vmatpush2.msra.mxu0 0.0
    %124 = vmatprep.subr.mxu0 0.0
    %125 = vmatpush2.msra.mxu0 0.0
    %126 = vmatprep.subr.mxu0 0.0
    %127 = vmatpush2.msra.mxu0 0.0
    %128 = vmatprep.subr.mxu0 0.0
    %129 = vmatpush2.msra.mxu0 0.0
    %130 = vmatprep.subr.mxu0 0.0
    %131 = vmatpush2.msra.mxu0 0.0
    %132 = vmatprep.mubr.f32.mxu0 0.0
    %133 = vmatmul.mubr.f32.gmra.mxu0 %v44
    %v134 = vpop.f32.mrf.mxu0
    %v135 = vadd.f32 %v66, %v134
    %v136 = vpop.f32.mrf.mxu0
    %137 = vdwg.mxu0
    %138 = vst [vmem:[#allocation2] sm:$0xff] %v135
    // Predicated region
    $region18: #{linear_model_forward.1} parent=1 // pred_check
      _
    $region19: #{linear_model_forward.1} parent=1 // pred_check_branch
      %140 = sbr.rel (0) target = $region21
    $region20: #{linear_model_forward.1} parent=1 // pred_region
      %s142 = ssub.s32 128, 128
      %143 = vsyncadd [#allocation3], %s142
      %s145 = sshll.u32 [#allocation2], 4
      %s146 = int_to_ptr.vmem [resolvable:$true] %s145
      %148 = dma.vmem_to_hbm [thread:$0]  %s146, 128, %s4, [#allocation3]
    $region21: #{linear_model_forward.1} parent=1 // pred_fallthru
      _
    // Predicated region
    $region22: #{linear_model_forward.1} parent=1 // pred_check
      _
    $region23: #{linear_model_forward.1} parent=1 // pred_check_branch
      %150 = sbr.rel (0) target = $region25
    $region24: #{linear_model_forward.1} parent=1 // pred_region
      %151 = dma.done [#allocation3], 128
    $region25: #{linear_model_forward.1} parent=1 // pred_fallthru
      _
    %152 = vsyncpa [#allocation3], 1

</llo_original>
